<compile_context>
chip_gen: v5e
topology: v5e:2x2
jax: 0.10.0
libtpu: 0.0.40
codegen_flags: <defaults>
</compile_context>

<pallas_src>
import jax
import jax.numpy as jnp
from jax.experimental import pallas as pl
from jax.experimental.pallas import tpu as pltpu

_EPS = 1e-6


def _make_qknorm_kernel(use_mxu_mean: bool):
    """Fused RMSNorm over q and k in a single pass over HBM."""

    if use_mxu_mean:
        def kernel(q_ref, k_ref, qs_ref, ks_ref, mmat_ref, qo_ref, ko_ref):
            # (W, W) block-diagonal group-mean matrix, DMA'd once (constant
            # index map); entries are 1/D so no extra VALU multiply is needed.
            mmat = mmat_ref[...]

            def rmsnorm(x_ref, s_ref, o_ref):
                x = x_ref[...]
                xf = x.astype(jnp.float32)
                sq = xf * xf
                # Segmented lane reduction + broadcast-back in one MXU matmul:
                # ms[r, j] = mean of sq over the D lanes of j's group.
                # HIGHEST precision: do not let the f32 matmul truncate sq.
                ms = jnp.dot(
                    sq, mmat,
                    preferred_element_type=jnp.float32,
                    precision=jax.lax.Precision.HIGHEST,
                )
                rrms = jax.lax.rsqrt(ms + _EPS)
                # Match PyTorch _forward: (x_f32 * rrms) -> cast to x.dtype ->
                # multiply by f32 scale -> cast to v.dtype.
                y = (xf * rrms).astype(x.dtype) * s_ref[...]
                o_ref[...] = y.astype(o_ref.dtype)

            rmsnorm(q_ref, qs_ref, qo_ref)
            rmsnorm(k_ref, ks_ref, ko_ref)

        return kernel

    def kernel(q_ref, k_ref, qs_ref, ks_ref, qo_ref, ko_ref):
        # Fallback (lane width not a multiple of 128): XLU lane reduce.
        def rmsnorm(x_ref, s_ref, o_ref):
            x = x_ref[...]
            xf = x.astype(jnp.float32)
            ms = jnp.mean(xf * xf, axis=-1, keepdims=True)
            rrms = jax.lax.rsqrt(ms + _EPS)
            y = (xf * rrms).astype(x.dtype) * s_ref[...]
            o_ref[...] = y.astype(o_ref.dtype)

        rmsnorm(q_ref, qs_ref, qo_ref)
        rmsnorm(k_ref, ks_ref, ko_ref)

    return kernel


def qknorm(q, k, v, q_scale, k_scale, *, block_rows=4096):
    """Pallas QKNorm.  q, k: [..., D]; q_scale, k_scale: [D]; output dtype = v.dtype."""
    D = q.shape[-1]
    assert k.shape[-1] == D
    assert q_scale.shape[-1] == D and k_scale.shape[-1] == D
    assert q.shape == k.shape, "q and k must share a shape in QKNorm"

    out_dtype = v.dtype
    q2 = q.reshape(-1, D)
    k2 = k.reshape(-1, D)
    R = q2.shape[0]

    qs32 = q_scale.reshape(-1).astype(jnp.float32)
    ks32 = k_scale.reshape(-1).astype(jnp.float32)

    # Lane-dense folding: pack 128/D consecutive rows into one 128-lane row.
    # If R isn't a multiple of the group, pad a few rows (cheap) rather than
    # degrading to masked sub-128-lane stores.
    pad_rows = 0
    if D < 128 and (128 % D == 0):
        group = 128 // D
        W = 128
        if R % group != 0:
            pad_rows = group - (R % group)
            zpad = jnp.zeros((pad_rows, D), dtype=q2.dtype)
            q2 = jnp.concatenate([q2, zpad], axis=0)
            k2 = jnp.concatenate([k2, zpad], axis=0)
        qf = q2.reshape(-1, W)                       # contiguous reshape, free
        kf = k2.reshape(-1, W)
        qs = jnp.tile(qs32, group).reshape(1, W)     # lane j -> scale[j % D]
        ks = jnp.tile(ks32, group).reshape(1, W)
    else:
        group = 1
        W = D
        qf, kf = q2, k2
        qs = qs32.reshape(1, W)
        ks = ks32.reshape(1, W)

    # Use the (idle) MXU for the lane-axis mean whenever lanes are full width.
    use_mxu_mean = (W % 128 == 0)
    if use_mxu_mean:
        lane = jnp.arange(W, dtype=jnp.int32)
        gi = lane // D                                # group id of each lane
        mmat = (gi[:, None] == gi[None, :]).astype(jnp.float32) * (1.0 / float(D))
    else:
        mmat = None

    Rr = qf.shape[0]

    # Dtype-aware sublane packing: 8 rows/vreg for 4-byte, 16 for 2-byte, 32 for 1-byte.
    itemsize = jnp.dtype(qf.dtype).itemsize
    sub = {4: 8, 2: 16, 1: 32}.get(itemsize, 8)
    bm = min(int(block_rows), -(-Rr // sub) * sub)   # don't exceed (rounded-up) rows
    bm = max(sub, (bm // sub) * sub)                 # multiple of sublane packing

    grid = (pl.cdiv(Rr, bm),)                        # ragged tail handled by masking

    row_spec = pl.BlockSpec((bm, W), lambda i: (i, 0))
    scale_spec = pl.BlockSpec((1, W), lambda i: (0, 0))

    # Double-buffered q/k inputs + q/k outputs + resident mmat/scales.
    out_itemsize = jnp.dtype(out_dtype).itemsize
    est = 2 * bm * W * (2 * itemsize + 2 * out_itemsize) + (W * W * 4) + (1 << 20)
    try:
        vmem_cap = int(pltpu.get_tpu_info().vmem_capacity_bytes)
    except Exception:
        vmem_cap = 64 << 20                          # conservative (v7x per-TC)
    vmem_limit = int(min(max(2 * est, 16 << 20), (vmem_cap * 3) // 4))

    in_specs = [row_spec, row_spec, scale_spec, scale_spec]
    args = [qf, kf, qs, ks]
    if use_mxu_mean:
        in_specs.append(pl.BlockSpec((W, W), lambda i: (0, 0)))
        args.append(mmat)

    qo, ko = pl.pallas_call(
        _make_qknorm_kernel(use_mxu_mean),
        out_shape=(
            jax.ShapeDtypeStruct((Rr, W), out_dtype),
            jax.ShapeDtypeStruct((Rr, W), out_dtype),
        ),
        grid_spec=pltpu.PrefetchScalarGridSpec(
            num_scalar_prefetch=0,
            grid=grid,
            in_specs=in_specs,
            out_specs=[row_spec, row_spec],
        ),
        compiler_params=pltpu.CompilerParams(
            dimension_semantics=("parallel",),
            vmem_limit_bytes=vmem_limit,
        ),
    )(*args)

    qo = qo.reshape(-1, D)
    ko = ko.reshape(-1, D)
    if pad_rows:
        qo = qo[:R]
        ko = ko[:R]
    return qo.reshape(q.shape), ko.reshape(k.shape)


def _reference(q, k, v, q_scale, k_scale):
    def rmsnorm(x, s):
        xf = x.astype(jnp.float32)
        rrms = jax.lax.rsqrt(jnp.mean(xf * xf, axis=-1, keepdims=True) + _EPS)
        return (xf * rrms).astype(x.dtype) * s.astype(jnp.float32)

    return (
        rmsnorm(q, q_scale).astype(v.dtype),
        rmsnorm(k, k_scale).astype(v.dtype),
    )


if __name__ == "__main__":
    key = jax.random.PRNGKey(0)
    kq, kk, kv = jax.random.split(key, 3)

    # Case 1: head_dim = 32 < 128 -> lane-dense folded path (4 rows per 128-lane row).
    B, H, L, D = 2, 4, 8, 32
    q = jax.random.normal(kq, (B, H, L, D), dtype=jnp.float32)
    k = jax.random.normal(kk, (B, H, L, D), dtype=jnp.float32)
    v = jax.random.normal(kv, (B, H, L, D), dtype=jnp.float32)
    q_scale = jnp.linspace(0.5, 1.5, D, dtype=jnp.float32)
    k_scale = jnp.linspace(1.5, 0.5, D, dtype=jnp.float32)

    q_out, k_out = qknorm(q, k, v, q_scale, k_scale)
    jax.block_until_ready((q_out, k_out))

    q_ref, k_ref = _reference(q, k, v, q_scale, k_scale)
    assert q_out.shape == q.shape and k_out.shape == k.shape
    assert q_out.dtype == v.dtype and k_out.dtype == v.dtype
    assert jnp.allclose(q_out, q_ref, atol=1e-5, rtol=1e-5)
    assert jnp.allclose(k_out, k_ref, atol=1e-5, rtol=1e-5)

    # Case 2: head_dim = 128 (already lane-dense, MXU mean) with a ragged last
    # block (24 rows, 16-row tiles) to exercise the cdiv grid / masked tail path.
    kq2, kk2, kv2 = jax.random.split(jax.random.PRNGKey(1), 3)
    B2, H2, L2, D2 = 1, 3, 8, 128
    q2 = jax.random.normal(kq2, (B2, H2, L2, D2), dtype=jnp.float32)
    k2 = jax.random.normal(kk2, (B2, H2, L2, D2), dtype=jnp.float32)
    v2 = jax.random.normal(kv2, (B2, H2, L2, D2), dtype=jnp.float32)
    qs2 = jnp.linspace(0.8, 1.2, D2, dtype=jnp.float32)
    ks2 = jnp.linspace(1.2, 0.8, D2, dtype=jnp.float32)

    q2_out, k2_out = qknorm(q2, k2, v2, qs2, ks2, block_rows=16)
    jax.block_until_ready((q2_out, k2_out))

    q2_ref, k2_ref = _reference(q2, k2, v2, qs2, ks2)
    assert jnp.allclose(q2_out, q2_ref, atol=1e-5, rtol=1e-5)
    assert jnp.allclose(k2_out, k2_ref, atol=1e-5, rtol=1e-5)

    # Case 3: D = 32 with R not a multiple of 128/D -> padded lane-dense path
    # (pads 3 rows, slices them off on the way out).
    kq3, kk3, kv3 = jax.random.split(jax.random.PRNGKey(2), 3)
    B3, H3, L3, D3 = 1, 3, 7, 32
    q3 = jax.random.normal(kq3, (B3, H3, L3, D3), dtype=jnp.float32)
    k3 = jax.random.normal(kk3, (B3, H3, L3, D3), dtype=jnp.float32)
    v3 = jax.random.normal(kv3, (B3, H3, L3, D3), dtype=jnp.bfloat16)
    qs3 = jnp.linspace(0.9, 1.1, D3, dtype=jnp.float32)
    ks3 = jnp.linspace(1.1, 0.9, D3, dtype=jnp.float32)

    q3_out, k3_out = qknorm(q3, k3, v3, qs3, ks3)
    jax.block_until_ready((q3_out, k3_out))

    q3_ref, k3_ref = _reference(q3, k3, v3, qs3, ks3)
    assert q3_out.dtype == v3.dtype and k3_out.dtype == v3.dtype
    assert jnp.allclose(
        q3_out.astype(jnp.float32), q3_ref.astype(jnp.float32), atol=2e-2, rtol=2e-2
    )
    assert jnp.allclose(
        k3_out.astype(jnp.float32), k3_ref.astype(jnp.float32), atol=2e-2, rtol=2e-2
    )

    print("KERNEL_OK")
</pallas_src>

<mosaic_0001>
module attributes {stable_mosaic.version = 11 : i64} {
  func.func @kernel(%arg0: i32, %arg1: memref<16x128xf32, #tpu.memory_space<vmem>>, %arg2: memref<16x128xf32, #tpu.memory_space<vmem>>, %arg3: memref<1x128xf32, #tpu.memory_space<vmem>>, %arg4: memref<1x128xf32, #tpu.memory_space<vmem>>, %arg5: memref<128x128xf32, #tpu.memory_space<vmem>>, %arg6: memref<16x128xf32, #tpu.memory_space<vmem>>, %arg7: memref<16x128xf32, #tpu.memory_space<vmem>>) attributes {dimension_semantics = [#tpu.dimension_semantics<parallel>], iteration_bounds = array<i64: 1>, scalar_prefetch = 0 : i64, scratch_operands = 0 : i64, tpu.core_type = #tpu.core_type<tc>, window_params = [{transform_indices = @transform_0, window_bounds = array<i64: 16, 128>}, {transform_indices = @transform_1, window_bounds = array<i64: 16, 128>}, {pipeline_mode = #tpu.pipeline_mode<synchronous>, transform_indices = @transform_2, window_bounds = array<i64: 1, 128>}, {pipeline_mode = #tpu.pipeline_mode<synchronous>, transform_indices = @transform_3, window_bounds = array<i64: 1, 128>}, {pipeline_mode = #tpu.pipeline_mode<synchronous>, transform_indices = @transform_4, window_bounds = array<i64: 128, 128>}, {transform_indices = @transform_5, window_bounds = array<i64: 16, 128>}, {transform_indices = @transform_6, window_bounds = array<i64: 16, 128>}]} {
    %c0 = arith.constant 0 : index
    %c0_0 = arith.constant 0 : index
    %0 = vector.load %arg5[%c0, %c0_0] : memref<128x128xf32, #tpu.memory_space<vmem>>, vector<128x128xf32>
    %c0_1 = arith.constant 0 : index
    %c0_2 = arith.constant 0 : index
    %1 = vector.load %arg1[%c0_1, %c0_2] : memref<16x128xf32, #tpu.memory_space<vmem>>, vector<16x128xf32>
    %2 = arith.mulf %1, %1 : vector<16x128xf32>
    %cst = arith.constant dense<0.000000e+00> : vector<16x128xf32>
    %3 = tpu.matmul %2, %0, %cst {dimension_numbers = #tpu.dot_dimension_numbers<[1], [0], [0], [1], [0, 0, 1, 1], [], []>, precision = #tpu.contract_precision<fp32>} : vector<16x128xf32>, vector<128x128xf32>, vector<16x128xf32> -> vector<16x128xf32>
    %cst_3 = arith.constant 9.99999997E-7 : f32
    %4 = vector.broadcast %cst_3 : f32 to vector<16x128xf32>
    %5 = arith.addf %3, %4 : vector<16x128xf32>
    %6 = math.rsqrt %5 : vector<16x128xf32>
    %7 = arith.mulf %1, %6 : vector<16x128xf32>
    %c0_4 = arith.constant 0 : index
    %c0_5 = arith.constant 0 : index
    %8 = vector.load %arg3[%c0_4, %c0_5] : memref<1x128xf32, #tpu.memory_space<vmem>>, vector<1x128xf32>
    %9 = vector.broadcast %8 : vector<1x128xf32> to vector<16x128xf32>
    %10 = arith.mulf %7, %9 : vector<16x128xf32>
    %c0_6 = arith.constant 0 : index
    %c0_7 = arith.constant 0 : index
    %11 = vector.load %arg6[%c0_6, %c0_7] : memref<16x128xf32, #tpu.memory_space<vmem>>, vector<16x128xf32>
    tpu.vector_store %arg6[%c0_6, %c0_7], %10 {strides = array<i32>} : memref<16x128xf32, #tpu.memory_space<vmem>>, vector<16x128xf32>,
    %c0_8 = arith.constant 0 : index
    %c0_9 = arith.constant 0 : index
    %12 = vector.load %arg2[%c0_8, %c0_9] : memref<16x128xf32, #tpu.memory_space<vmem>>, vector<16x128xf32>
    %13 = arith.mulf %12, %12 : vector<16x128xf32>
    %cst_10 = arith.constant dense<0.000000e+00> : vector<16x128xf32>
    %14 = tpu.matmul %13, %0, %cst_10 {dimension_numbers = #tpu.dot_dimension_numbers<[1], [0], [0], [1], [0, 0, 1, 1], [], []>, precision = #tpu.contract_precision<fp32>} : vector<16x128xf32>, vector<128x128xf32>, vector<16x128xf32> -> vector<16x128xf32>
    %cst_11 = arith.constant 9.99999997E-7 : f32
    %15 = vector.broadcast %cst_11 : f32 to vector<16x128xf32>
    %16 = arith.addf %14, %15 : vector<16x128xf32>
    %17 = math.rsqrt %16 : vector<16x128xf32>
    %18 = arith.mulf %12, %17 : vector<16x128xf32>
    %c0_12 = arith.constant 0 : index
    %c0_13 = arith.constant 0 : index
    %19 = vector.load %arg4[%c0_12, %c0_13] : memref<1x128xf32, #tpu.memory_space<vmem>>, vector<1x128xf32>
    %20 = vector.broadcast %19 : vector<1x128xf32> to vector<16x128xf32>
    %21 = arith.mulf %18, %20 : vector<16x128xf32>
    %c0_14 = arith.constant 0 : index
    %c0_15 = arith.constant 0 : index
    %22 = vector.load %arg7[%c0_14, %c0_15] : memref<16x128xf32, #tpu.memory_space<vmem>>, vector<16x128xf32>
    tpu.vector_store %arg7[%c0_14, %c0_15], %21 {strides = array<i32>} : memref<16x128xf32, #tpu.memory_space<vmem>>, vector<16x128xf32>,
    return
  }
  func.func @transform_0(%arg0: i32) -> (i32, i32) {
    %c0_i32 = arith.constant 0 : i32
    %c0_i32_0 = arith.constant 0 : i32
    return %arg0, %c0_i32 : i32, i32
  }
  func.func @transform_1(%arg0: i32) -> (i32, i32) {
    %c0_i32 = arith.constant 0 : i32
    %c0_i32_0 = arith.constant 0 : i32
    return %arg0, %c0_i32 : i32, i32
  }
  func.func @transform_2(%arg0: i32) -> (i32, i32) {
    %c0_i32 = arith.constant 0 : i32
    %c0_i32_0 = arith.constant 0 : i32
    %c0_i32_1 = arith.constant 0 : i32
    return %c0_i32, %c0_i32_0 : i32, i32
  }
  func.func @transform_3(%arg0: i32) -> (i32, i32) {
    %c0_i32 = arith.constant 0 : i32
    %c0_i32_0 = arith.constant 0 : i32
    %c0_i32_1 = arith.constant 0 : i32
    return %c0_i32, %c0_i32_0 : i32, i32
  }
  func.func @transform_4(%arg0: i32) -> (i32, i32) {
    %c0_i32 = arith.constant 0 : i32
    %c0_i32_0 = arith.constant 0 : i32
    %c0_i32_1 = arith.constant 0 : i32
    return %c0_i32, %c0_i32_0 : i32, i32
  }
  func.func @transform_5(%arg0: i32) -> (i32, i32) {
    %c0_i32 = arith.constant 0 : i32
    %c0_i32_0 = arith.constant 0 : i32
    return %arg0, %c0_i32 : i32, i32
  }
  func.func @transform_6(%arg0: i32) -> (i32, i32) {
    %c0_i32 = arith.constant 0 : i32
    %c0_i32_0 = arith.constant 0 : i32
    return %arg0, %c0_i32 : i32, i32
  }
}

</mosaic_0001>

<llo_original>
// kernel: tpu_custom_call.1
$region0: #{tpu_custom_call.1}
  #allocation0 [shape = 'u32[]', space=smem, size = 0x4, offset = 0x4, fixed_abs, tag = 'smem constant byte address 0x4 - core index']
  #allocation1 [shape = 'u32[72,128]{1,0:T(1,128)}', space=vmem, size = 0x9000, scoped, tag = 'internal scratch']
  %s0 = inlined_call_operand.hbm [shape: f32[16,128], index: 0, kind: input, shape index: {}]
  %s1 = inlined_call_operand.hbm [shape: f32[16,128], index: 1, kind: input, shape index: {}]
  %s2 = inlined_call_operand.vmem [shape: f32[1,128], index: 2, kind: input, shape index: {}]
  %s3 = inlined_call_operand.vmem [shape: f32[1,128], index: 3, kind: input, shape index: {}]
  %s4 = inlined_call_operand.hbm [shape: f32[128,128], index: 4, kind: input, shape index: {}]
  %s5 = inlined_call_operand.hbm [shape: f32[16,128], index: 5, kind: output, shape index: {0}]
  %s6 = inlined_call_operand.hbm [shape: f32[16,128], index: 6, kind: output, shape index: {1}]
  %7 = xla_tuple %s5, %s6
  %s8 = sld [smem:[#allocation0]]
  $region50: #{tpu_custom_call.1} parent=0
    _
  %s10 = ssub.s32 1, %s8
  %s11 = scalar_select 0, %s10, %s8
  $region1: #{tpu_custom_call.1} parent=0
    #allocation2 [shape = 'u8[8192]{0}', space=vmem, size = 0x2000, scoped, tag = 'input window, operand 0, single buffered']
    #allocation3 [shape = 's32[1]{0}', space=sflag, size = 0x4, scoped, tag = 'scoped memory for tpu_custom_call.1']
    #allocation4 [shape = 's32[1]{0}', space=sflag, size = 0x4, scoped, tag = 'scoped memory for tpu_custom_call.1']
    #allocation5 [shape = 'u8[8192]{0}', space=vmem, size = 0x2000, scoped, tag = 'input window, operand 1, single buffered']
    #allocation6 [shape = 's32[1]{0}', space=sflag, size = 0x4, scoped, tag = 'scoped memory for tpu_custom_call.1']
    #allocation7 [shape = 'u8[65536]{0}', space=vmem, size = 0x10000, scoped, tag = 'input window, operand 4, single buffered']
    #allocation8 [shape = 'u8[8192]{0}', space=vmem, size = 0x2000, scoped, tag = 'output window, operand 0, single buffered']
    #allocation9 [shape = 'u8[8192]{0}', space=vmem, size = 0x2000, scoped, tag = 'output window, operand 1, single buffered']
    #allocation10 [shape = 's32[1]{0}', space=sflag, size = 0x4, scoped, tag = 'scoped memory for tpu_custom_call.1']
    %12 = vsyncpa [#allocation3], 0
    %13 = vsyncpa [#allocation6], 0
    %14 = vsyncpa [#allocation4], 0
    %15 = vsyncpa [#allocation10], 0
    // Predicated region
    $region2: #{tpu_custom_call.1} parent=1 // pred_check
      _
    $region3: #{tpu_custom_call.1} parent=1 // pred_check_branch
      %17 = sbr.rel (0) target = $region5
    $region4: #{tpu_custom_call.1} parent=1 // pred_region
      %19 = vsyncadd [#allocation3], 0
      %s20 = sshll.u32 %s0, 4
      %s21 = int_to_ptr.hbm [resolvable:$true] %s20
      %s22 = sshll.u32 [#allocation2], 4
      %s23 = int_to_ptr.vmem [resolvable:$true] %s22
      %28 = dma.hbm_to_vmem [thread:$0]  %s21, 256, %s23, [#allocation3], 128, 128, 8
    $region5: #{tpu_custom_call.1} parent=1 // pred_fallthru
      _
    // Predicated region
    $region6: #{tpu_custom_call.1} parent=1 // pred_check
      _
    $region7: #{tpu_custom_call.1} parent=1 // pred_check_branch
      %30 = sbr.rel (0) target = $region9
    $region8: #{tpu_custom_call.1} parent=1 // pred_region
      %32 = vsyncadd [#allocation6], 0
      %s33 = sshll.u32 %s1, 4
      %s34 = int_to_ptr.hbm [resolvable:$true] %s33
      %s35 = sshll.u32 [#allocation5], 4
      %s36 = int_to_ptr.vmem [resolvable:$true] %s35
      %41 = dma.hbm_to_vmem [thread:$0]  %s34, 256, %s36, [#allocation6], 128, 128, 8
    $region9: #{tpu_custom_call.1} parent=1 // pred_fallthru
      _
    // Predicated region
    $region10: #{tpu_custom_call.1} parent=1 // pred_check
      _
    $region11: #{tpu_custom_call.1} parent=1 // pred_check_branch
      %43 = sbr.rel (0) target = $region13
    $region12: #{tpu_custom_call.1} parent=1 // pred_region
      _
    $region13: #{tpu_custom_call.1} parent=1 // pred_fallthru
      _
    // Predicated region
    $region14: #{tpu_custom_call.1} parent=1 // pred_check
      _
    $region15: #{tpu_custom_call.1} parent=1 // pred_check_branch
      %45 = sbr.rel (0) target = $region17
    $region16: #{tpu_custom_call.1} parent=1 // pred_region
      _
    $region17: #{tpu_custom_call.1} parent=1 // pred_fallthru
      _
    // Predicated region
    $region18: #{tpu_custom_call.1} parent=1 // pred_check
      _
    $region19: #{tpu_custom_call.1} parent=1 // pred_check_branch
      %47 = sbr.rel (0) target = $region21
    $region20: #{tpu_custom_call.1} parent=1 // pred_region
      %49 = vsyncadd [#allocation6], 0
      %s50 = sshll.u32 %s4, 4
      %s51 = int_to_ptr.hbm [resolvable:$true] %s50
      %s52 = sshll.u32 [#allocation7], 4
      %s53 = int_to_ptr.vmem [resolvable:$true] %s52
      %58 = dma.hbm_to_vmem [thread:$0]  %s51, 2048, %s53, [#allocation6], 128, 128, 8
    $region21: #{tpu_custom_call.1} parent=1 // pred_fallthru
      _
    // Predicated region
    $region22: #{tpu_custom_call.1} parent=1 // pred_check
      _
    $region23: #{tpu_custom_call.1} parent=1 // pred_check_branch
      %60 = sbr.rel (0) target = $region25
    $region24: #{tpu_custom_call.1} parent=1 // pred_region
      %62 = dma.done [#allocation3], 256
    $region25: #{tpu_custom_call.1} parent=1 // pred_fallthru
      _
    // Predicated region
    $region26: #{tpu_custom_call.1} parent=1 // pred_check
      _
    $region27: #{tpu_custom_call.1} parent=1 // pred_check_branch
      %64 = sbr.rel (0) target = $region29
    $region28: #{tpu_custom_call.1} parent=1 // pred_region
      %66 = dma.done [#allocation6], 256
    $region29: #{tpu_custom_call.1} parent=1 // pred_fallthru
      _
    // Predicated region
    $region30: #{tpu_custom_call.1} parent=1 // pred_check
      _
    $region31: #{tpu_custom_call.1} parent=1 // pred_check_branch
      %68 = sbr.rel (0) target = $region33
    $region32: #{tpu_custom_call.1} parent=1 // pred_region
      %70 = dma.done [#allocation6], 2048
    $region33: #{tpu_custom_call.1} parent=1 // pred_fallthru
      _
    %v71 = vld [vmem:[#allocation7] sm:$0xff]
    %v72 = vld [vmem:[#allocation7 + $0x8] sm:$0xff]
    %v73 = vld [vmem:[#allocation7 + $0x10] sm:$0xff]
    %v74 = vld [vmem:[#allocation7 + $0x18] sm:$0xff]
    %v75 = vld [vmem:[#allocation7 + $0x20] sm:$0xff]
    %v76 = vld [vmem:[#allocation7 + $0x28] sm:$0xff]
    %v77 = vld [vmem:[#allocation7 + $0x30] sm:$0xff]
    %v78 = vld [vmem:[#allocation7 + $0x38] sm:$0xff]
    %v79 = vld [vmem:[#allocation7 + $0x40] sm:$0xff]
    %v80 = vld [vmem:[#allocation7 + $0x48] sm:$0xff]
    %v81 = vld [vmem:[#allocation7 + $0x50] sm:$0xff]
    %v82 = vld [vmem:[#allocation7 + $0x58] sm:$0xff]
    %v83 = vld [vmem:[#allocation7 + $0x60] sm:$0xff]
    %v84 = vld [vmem:[#allocation7 + $0x68] sm:$0xff]
    %v85 = vld [vmem:[#allocation7 + $0x70] sm:$0xff]
    %v86 = vld [vmem:[#allocation7 + $0x78] sm:$0xff]
    %v87 = vld [vmem:[#allocation2] sm:$0xff]
    %v88 = vld [vmem:[#allocation2 + $0x8] sm:$0xff]
    %v89 = vmul.f32 %v87, %v87
    %v90 = vmul.f32 %v88, %v88
    %v91 = vand.u32 %v86, 4294901760
    %92 = vmatpush.msra.mxu0 %v91
    %v93 = vand.u32 %v85, 4294901760
    %94 = vmatpush.msra.mxu0 %v93
    %v95 = vand.u32 %v84, 4294901760
    %96 = vmatpush.msra.mxu0 %v95
    %v97 = vand.u32 %v83, 4294901760
    %98 = vmatpush.msra.mxu0 %v97
    %v99 = vand.u32 %v82, 4294901760
    %100 = vmatpush.msra.mxu0 %v99
    %v101 = vand.u32 %v81, 4294901760
    %102 = vmatpush.msra.mxu0 %v101
    %v103 = vand.u32 %v80, 4294901760
    %104 = vmatpush.msra.mxu0 %v103
    %v105 = vand.u32 %v79, 4294901760
    %106 = vmatpush.msra.mxu0 %v105
    %v107 = vand.u32 %v78, 4294901760
    %108 = vmatpush.msra.mxu0 %v107
    %v109 = vand.u32 %v77, 4294901760
    %110 = vmatpush.msra.mxu0 %v109
    %v111 = vand.u32 %v76, 4294901760
    %112 = vmatpush.msra.mxu0 %v111
    %v113 = vand.u32 %v75, 4294901760
    %114 = vmatpush.msra.mxu0 %v113
    %v115 = vand.u32 %v74, 4294901760
    %116 = vmatpush.msra.mxu0 %v115
    %v117 = vand.u32 %v73, 4294901760
    %118 = vmatpush.msra.mxu0 %v117
    %v119 = vand.u32 %v72, 4294901760
    %120 = vmatpush.msra.mxu0 %v119
    %v121 = vand.u32 %v71, 4294901760
    %122 = vmatpush.msra.mxu0 %v121
    %v123 = vand.u32 %v89, 4294901760
    %v124 = vsub.f32 %v89, %v123
    %v125 = vand.u32 %v124, 4294901760
    %v126 = vsub.f32 %v124, %v125
    %v127 = vand.u32 %v126, 4294901760
    %128 = vmatmul.f32.gmra.mxu0 %v127
    %v129 = vpop.f32.mrf.mxu0
    %v130 = vadd.f32 1e-06, %v129
    %v131 = vand.u32 %v90, 4294901760
    %v132 = vsub.f32 %v90, %v131
    %v133 = vand.u32 %v132, 4294901760
    %v134 = vsub.f32 %v132, %v133
    %v135 = vand.u32 %v134, 4294901760
    %136 = vmatmul.f32.gmra.mxu0 %v135
    %v137 = vpop.f32.mrf.mxu0
    %v138 = vadd.f32 1e-06, %v137
    %139 = vdwg.mxu0
    %v140 = vand.u32 %v86, 4294901760
    %v141 = vsub.f32 %v86, %v140
    %v142 = vand.u32 %v141, 4294901760
    %v143 = vsub.f32 %v141, %v142
    %v144 = vand.u32 %v143, 4294901760
    %145 = vmatpush.msra.mxu0 %v144
    %v146 = vand.u32 %v85, 4294901760
    %v147 = vsub.f32 %v85, %v146
    %v148 = vand.u32 %v147, 4294901760
    %v149 = vsub.f32 %v147, %v148
    %v150 = vand.u32 %v149, 4294901760
    %151 = vmatpush.msra.mxu0 %v150
    %v152 = vand.u32 %v84, 4294901760
    %v153 = vsub.f32 %v84, %v152
    %v154 = vand.u32 %v153, 4294901760
    %v155 = vsub.f32 %v153, %v154
    %v156 = vand.u32 %v155, 4294901760
    %157 = vmatpush.msra.mxu0 %v156
    %v158 = vand.u32 %v83, 4294901760
    %v159 = vsub.f32 %v83, %v158
    %v160 = vand.u32 %v159, 4294901760
    %v161 = vsub.f32 %v159, %v160
    %v162 = vand.u32 %v161, 4294901760
    %163 = vmatpush.msra.mxu0 %v162
    %v164 = vand.u32 %v82, 4294901760
    %v165 = vsub.f32 %v82, %v164
    %v166 = vand.u32 %v165, 4294901760
    %v167 = vsub.f32 %v165, %v166
    %v168 = vand.u32 %v167, 4294901760
    %169 = vmatpush.msra.mxu0 %v168
    %v170 = vand.u32 %v81, 4294901760
    %v171 = vsub.f32 %v81, %v170
    %v172 = vand.u32 %v171, 4294901760
    %v173 = vsub.f32 %v171, %v172
    %v174 = vand.u32 %v173, 4294901760
    %175 = vmatpush.msra.mxu0 %v174
    %v176 = vand.u32 %v80, 4294901760
    %v177 = vsub.f32 %v80, %v176
    %v178 = vand.u32 %v177, 4294901760
    %v179 = vsub.f32 %v177, %v178
    %v180 = vand.u32 %v179, 4294901760
    %181 = vmatpush.msra.mxu0 %v180
    %v182 = vand.u32 %v79, 4294901760
    %v183 = vsub.f32 %v79, %v182
    %v184 = vand.u32 %v183, 4294901760
    %v185 = vsub.f32 %v183, %v184
    %v186 = vand.u32 %v185, 4294901760
    %187 = vmatpush.msra.mxu0 %v186
    %v188 = vand.u32 %v78, 4294901760
    %v189 = vsub.f32 %v78, %v188
    %v190 = vand.u32 %v189, 4294901760
    %v191 = vsub.f32 %v189, %v190
    %v192 = vand.u32 %v191, 4294901760
    %193 = vmatpush.msra.mxu0 %v192
    %v194 = vand.u32 %v77, 4294901760
    %v195 = vsub.f32 %v77, %v194
    %v196 = vand.u32 %v195, 4294901760
    %v197 = vsub.f32 %v195, %v196
    %v198 = vand.u32 %v197, 4294901760
    %199 = vmatpush.msra.mxu0 %v198
    %v200 = vand.u32 %v76, 4294901760
    %v201 = vsub.f32 %v76, %v200
    %v202 = vand.u32 %v201, 4294901760
    %v203 = vsub.f32 %v201, %v202
    %v204 = vand.u32 %v203, 4294901760
    %205 = vmatpush.msra.mxu0 %v204
    %v206 = vand.u32 %v75, 4294901760
    %v207 = vsub.f32 %v75, %v206
    %v208 = vand.u32 %v207, 4294901760
    %v209 = vsub.f32 %v207, %v208
    %v210 = vand.u32 %v209, 4294901760
    %211 = vmatpush.msra.mxu0 %v210
    %v212 = vand.u32 %v74, 4294901760
    %v213 = vsub.f32 %v74, %v212
    %v214 = vand.u32 %v213, 4294901760
    %v215 = vsub.f32 %v213, %v214
    %v216 = vand.u32 %v215, 4294901760
    %217 = vmatpush.msra.mxu0 %v216
    %v218 = vand.u32 %v73, 4294901760
    %v219 = vsub.f32 %v73, %v218
    %v220 = vand.u32 %v219, 4294901760
    %v221 = vsub.f32 %v219, %v220
    %v222 = vand.u32 %v221, 4294901760
    %223 = vmatpush.msra.mxu0 %v222
    %v224 = vand.u32 %v72, 4294901760
    %v225 = vsub.f32 %v72, %v224
    %v226 = vand.u32 %v225, 4294901760
    %v227 = vsub.f32 %v225, %v226
    %v228 = vand.u32 %v227, 4294901760
    %229 = vmatpush.msra.mxu0 %v228
    %v230 = vand.u32 %v71, 4294901760
    %v231 = vsub.f32 %v71, %v230
    %v232 = vand.u32 %v231, 4294901760
    %v233 = vsub.f32 %v231, %v232
    %v234 = vand.u32 %v233, 4294901760
    %235 = vmatpush.msra.mxu0 %v234
    %v236 = vand.u32 %v89, 4294901760
    %237 = vmatmul.f32.gmra.mxu0 %v236
    %v238 = vpop.f32.mrf.mxu0
    %v239 = vadd.f32 %v130, %v238
    %v240 = vand.u32 %v90, 4294901760
    %241 = vmatmul.f32.gmra.mxu0 %v240
    %v242 = vpop.f32.mrf.mxu0
    %v243 = vadd.f32 %v138, %v242
    %244 = vdwg.mxu0
    %v245 = vand.u32 %v86, 4294901760
    %v246 = vsub.f32 %v86, %v245
    %247 = vmatpush.msra.mxu0 %v246
    %v248 = vand.u32 %v85, 4294901760
    %v249 = vsub.f32 %v85, %v248
    %250 = vmatpush.msra.mxu0 %v249
    %v251 = vand.u32 %v84, 4294901760
    %v252 = vsub.f32 %v84, %v251
    %253 = vmatpush.msra.mxu0 %v252
    %v254 = vand.u32 %v83, 4294901760
    %v255 = vsub.f32 %v83, %v254
    %256 = vmatpush.msra.mxu0 %v255
    %v257 = vand.u32 %v82, 4294901760
    %v258 = vsub.f32 %v82, %v257
    %259 = vmatpush.msra.mxu0 %v258
    %v260 = vand.u32 %v81, 4294901760
    %v261 = vsub.f32 %v81, %v260
    %262 = vmatpush.msra.mxu0 %v261
    %v263 = vand.u32 %v80, 4294901760
    %v264 = vsub.f32 %v80, %v263
    %265 = vmatpush.msra.mxu0 %v264
    %v266 = vand.u32 %v79, 4294901760
    %v267 = vsub.f32 %v79, %v266
    %268 = vmatpush.msra.mxu0 %v267
    %v269 = vand.u32 %v78, 4294901760
    %v270 = vsub.f32 %v78, %v269
    %271 = vmatpush.msra.mxu0 %v270
    %v272 = vand.u32 %v77, 4294901760
    %v273 = vsub.f32 %v77, %v272
    %274 = vmatpush.msra.mxu0 %v273
    %v275 = vand.u32 %v76, 4294901760
    %v276 = vsub.f32 %v76, %v275
    %277 = vmatpush.msra.mxu0 %v276
    %v278 = vand.u32 %v75, 4294901760
    %v279 = vsub.f32 %v75, %v278
    %280 = vmatpush.msra.mxu0 %v279
    %v281 = vand.u32 %v74, 4294901760
    %v282 = vsub.f32 %v74, %v281
    %283 = vmatpush.msra.mxu0 %v282
    %v284 = vand.u32 %v73, 4294901760
    %v285 = vsub.f32 %v73, %v284
    %286 = vmatpush.msra.mxu0 %v285
    %v287 = vand.u32 %v72, 4294901760
    %v288 = vsub.f32 %v72, %v287
    %289 = vmatpush.msra.mxu0 %v288
    %v290 = vand.u32 %v71, 4294901760
    %v291 = vsub.f32 %v71, %v290
    %292 = vmatpush.msra.mxu0 %v291
    %v293 = vand.u32 %v89, 4294901760
    %v294 = vsub.f32 %v89, %v293
    %295 = vmatmul.f32.gmra.mxu0 %v294
    %v296 = vpop.f32.mrf.mxu0
    %v297 = vadd.f32 %v239, %v296
    %v298 = vand.u32 %v90, 4294901760
    %v299 = vsub.f32 %v90, %v298
    %300 = vmatmul.f32.gmra.mxu0 %v299
    %v301 = vpop.f32.mrf.mxu0
    %v302 = vadd.f32 %v243, %v301
    %303 = vdwg.mxu0
    %v304 = vand.u32 %v86, 4294901760
    %305 = vmatpush.msra.mxu0 %v304
    %v306 = vand.u32 %v85, 4294901760
    %307 = vmatpush.msra.mxu0 %v306
    %v308 = vand.u32 %v84, 4294901760
    %309 = vmatpush.msra.mxu0 %v308
    %v310 = vand.u32 %v83, 4294901760
    %311 = vmatpush.msra.mxu0 %v310
    %v312 = vand.u32 %v82, 4294901760
    %313 = vmatpush.msra.mxu0 %v312
    %v314 = vand.u32 %v81, 4294901760
    %315 = vmatpush.msra.mxu0 %v314
    %v316 = vand.u32 %v80, 4294901760
    %317 = vmatpush.msra.mxu0 %v316
    %v318 = vand.u32 %v79, 4294901760
    %319 = vmatpush.msra.mxu0 %v318
    %v320 = vand.u32 %v78, 4294901760
    %321 = vmatpush.msra.mxu0 %v320
    %v322 = vand.u32 %v77, 4294901760
    %323 = vmatpush.msra.mxu0 %v322
    %v324 = vand.u32 %v76, 4294901760
    %325 = vmatpush.msra.mxu0 %v324
    %v326 = vand.u32 %v75, 4294901760
    %327 = vmatpush.msra.mxu0 %v326
    %v328 = vand.u32 %v74, 4294901760
    %329 = vmatpush.msra.mxu0 %v328
    %v330 = vand.u32 %v73, 4294901760
    %331 = vmatpush.msra.mxu0 %v330
    %v332 = vand.u32 %v72, 4294901760
    %333 = vmatpush.msra.mxu0 %v332
    %v334 = vand.u32 %v71, 4294901760
    %335 = vmatpush.msra.mxu0 %v334
    %v336 = vand.u32 %v89, 4294901760
    %v337 = vsub.f32 %v89, %v336
    %v338 = vand.u32 %v337, 4294901760
    %339 = vmatmul.f32.gmra.mxu0 %v338
    %v340 = vpop.f32.mrf.mxu0
    %v341 = vadd.f32 %v297, %v340
    %v342 = vand.u32 %v90, 4294901760
    %v343 = vsub.f32 %v90, %v342
    %v344 = vand.u32 %v343, 4294901760
    %345 = vmatmul.f32.gmra.mxu0 %v344
    %v346 = vpop.f32.mrf.mxu0
    %v347 = vadd.f32 %v302, %v346
    %348 = vdwg.mxu0
    %v349 = vand.u32 %v86, 4294901760
    %v350 = vsub.f32 %v86, %v349
    %v351 = vand.u32 %v350, 4294901760
    %352 = vmatpush.msra.mxu0 %v351
    %v353 = vand.u32 %v85, 4294901760
    %v354 = vsub.f32 %v85, %v353
    %v355 = vand.u32 %v354, 4294901760
    %356 = vmatpush.msra.mxu0 %v355
    %v357 = vand.u32 %v84, 4294901760
    %v358 = vsub.f32 %v84, %v357
    %v359 = vand.u32 %v358, 4294901760
    %360 = vmatpush.msra.mxu0 %v359
    %v361 = vand.u32 %v83, 4294901760
    %v362 = vsub.f32 %v83, %v361
    %v363 = vand.u32 %v362, 4294901760
    %364 = vmatpush.msra.mxu0 %v363
    %v365 = vand.u32 %v82, 4294901760
    %v366 = vsub.f32 %v82, %v365
    %v367 = vand.u32 %v366, 4294901760
    %368 = vmatpush.msra.mxu0 %v367
    %v369 = vand.u32 %v81, 4294901760
    %v370 = vsub.f32 %v81, %v369
    %v371 = vand.u32 %v370, 4294901760
    %372 = vmatpush.msra.mxu0 %v371
    %v373 = vand.u32 %v80, 4294901760
    %v374 = vsub.f32 %v80, %v373
    %v375 = vand.u32 %v374, 4294901760
    %376 = vmatpush.msra.mxu0 %v375
    %v377 = vand.u32 %v79, 4294901760
    %v378 = vsub.f32 %v79, %v377
    %v379 = vand.u32 %v378, 4294901760
    %380 = vmatpush.msra.mxu0 %v379
    %v381 = vand.u32 %v78, 4294901760
    %v382 = vsub.f32 %v78, %v381
    %v383 = vand.u32 %v382, 4294901760
    %384 = vmatpush.msra.mxu0 %v383
    %v385 = vand.u32 %v77, 4294901760
    %v386 = vsub.f32 %v77, %v385
    %v387 = vand.u32 %v386, 4294901760
    %388 = vmatpush.msra.mxu0 %v387
    %v389 = vand.u32 %v76, 4294901760
    %v390 = vsub.f32 %v76, %v389
    %v391 = vand.u32 %v390, 4294901760
    %392 = vmatpush.msra.mxu0 %v391
    %v393 = vand.u32 %v75, 4294901760
    %v394 = vsub.f32 %v75, %v393
    %v395 = vand.u32 %v394, 4294901760
    %396 = vmatpush.msra.mxu0 %v395
    %v397 = vand.u32 %v74, 4294901760
    %v398 = vsub.f32 %v74, %v397
    %v399 = vand.u32 %v398, 4294901760
    %400 = vmatpush.msra.mxu0 %v399
    %v401 = vand.u32 %v73, 4294901760
    %v402 = vsub.f32 %v73, %v401
    %v403 = vand.u32 %v402, 4294901760
    %404 = vmatpush.msra.mxu0 %v403
    %v405 = vand.u32 %v72, 4294901760
    %v406 = vsub.f32 %v72, %v405
    %v407 = vand.u32 %v406, 4294901760
    %408 = vmatpush.msra.mxu0 %v407
    %v409 = vand.u32 %v71, 4294901760
    %v410 = vsub.f32 %v71, %v409
    %v411 = vand.u32 %v410, 4294901760
    %412 = vmatpush.msra.mxu0 %v411
    %v413 = vand.u32 %v89, 4294901760
    %414 = vmatmul.f32.gmra.mxu0 %v413
    %v415 = vpop.f32.mrf.mxu0
    %v416 = vadd.f32 %v341, %v415
    %v417 = vand.u32 %v90, 4294901760
    %418 = vmatmul.f32.gmra.mxu0 %v417
    %v419 = vpop.f32.mrf.mxu0
    %v420 = vadd.f32 %v347, %v419
    %421 = vdwg.mxu0
    %v422 = vand.u32 %v86, 4294901760
    %423 = vmatpush.msra.mxu0 %v422
    %v424 = vand.u32 %v85, 4294901760
    %425 = vmatpush.msra.mxu0 %v424
    %v426 = vand.u32 %v84, 4294901760
    %427 = vmatpush.msra.mxu0 %v426
    %v428 = vand.u32 %v83, 4294901760
    %429 = vmatpush.msra.mxu0 %v428
    %v430 = vand.u32 %v82, 4294901760
    %431 = vmatpush.msra.mxu0 %v430
    %v432 = vand.u32 %v81, 4294901760
    %433 = vmatpush.msra.mxu0 %v432
    %v434 = vand.u32 %v80, 4294901760
    %435 = vmatpush.msra.mxu0 %v434
    %v436 = vand.u32 %v79, 4294901760
    %437 = vmatpush.msra.mxu0 %v436
    %v438 = vand.u32 %v78, 4294901760
    %439 = vmatpush.msra.mxu0 %v438
    %v440 = vand.u32 %v77, 4294901760
    %441 = vmatpush.msra.mxu0 %v440
    %v442 = vand.u32 %v76, 4294901760
    %443 = vmatpush.msra.mxu0 %v442
    %v444 = vand.u32 %v75, 4294901760
    %445 = vmatpush.msra.mxu0 %v444
    %v446 = vand.u32 %v74, 4294901760
    %447 = vmatpush.msra.mxu0 %v446
    %v448 = vand.u32 %v73, 4294901760
    %449 = vmatpush.msra.mxu0 %v448
    %v450 = vand.u32 %v72, 4294901760
    %451 = vmatpush.msra.mxu0 %v450
    %v452 = vand.u32 %v71, 4294901760
    %453 = vmatpush.msra.mxu0 %v452
    %v454 = vand.u32 %v89, 4294901760
    %455 = vmatmul.f32.gmra.mxu0 %v454
    %v456 = vpop.f32.mrf.mxu0
    %v457 = vadd.f32 %v416, %v456
    %v458 = vand.u32 %v90, 4294901760
    %459 = vmatmul.f32.gmra.mxu0 %v458
    %v460 = vpop.f32.mrf.mxu0
    %v461 = vadd.f32 %v420, %v460
    %462 = vdwg.mxu0
    %v463 = vrsqrt.pop %v457
    %v464 = vmul.f32 %v463, %v457
    %v465 = vmul.f32 %v464, %v463
    %v466 = vmul.f32 0.5, %v465
    %v467 = vsub.f32 1.5, %v466
    %v468 = vmul.f32 %v463, %v467
    %vm469 = vweird.f32 %v457
    %vm470 = vweird.f32 %v463
    %vm471 = vmor %vm469, %vm470
    %v472 = vsel %vm471, %v463, %v468
    %v473 = vrsqrt.pop %v461
    %v474 = vmul.f32 %v473, %v461
    %v475 = vmul.f32 %v474, %v473
    %v476 = vmul.f32 0.5, %v475
    %v477 = vsub.f32 1.5, %v476
    %v478 = vmul.f32 %v473, %v477
    %vm479 = vweird.f32 %v461
    %vm480 = vweird.f32 %v473
    %vm481 = vmor %vm479, %vm480
    %v482 = vsel %vm481, %v473, %v478
    %v483 = vmul.f32 %v87, %v472
    %v484 = vmul.f32 %v88, %v482
    %v485 = vld [vmem:[%s2] sm:$0x1]
    %v487 = vperm.slane %v485, 0
    %v489 = vmul.f32 %v483, %v487
    %v490 = vmul.f32 %v484, %v487
    %491 = vst [vmem:[#allocation8] sm:$0xff] %v489
    %492 = vst [vmem:[#allocation8 + $0x8] sm:$0xff] %v490
    %v493 = vld [vmem:[#allocation5] sm:$0xff]
    %v494 = vld [vmem:[#allocation5 + $0x8] sm:$0xff]
    %v495 = vmul.f32 %v493, %v493
    %v496 = vmul.f32 %v494, %v494
    %v497 = vand.u32 %v86, 4294901760
    %498 = vmatpush.msra.mxu0 %v497
    %v499 = vand.u32 %v85, 4294901760
    %500 = vmatpush.msra.mxu0 %v499
    %v501 = vand.u32 %v84, 4294901760
    %502 = vmatpush.msra.mxu0 %v501
    %v503 = vand.u32 %v83, 4294901760
    %504 = vmatpush.msra.mxu0 %v503
    %v505 = vand.u32 %v82, 4294901760
    %506 = vmatpush.msra.mxu0 %v505
    %v507 = vand.u32 %v81, 4294901760
    %508 = vmatpush.msra.mxu0 %v507
    %v509 = vand.u32 %v80, 4294901760
    %510 = vmatpush.msra.mxu0 %v509
    %v511 = vand.u32 %v79, 4294901760
    %512 = vmatpush.msra.mxu0 %v511
    %v513 = vand.u32 %v78, 4294901760
    %514 = vmatpush.msra.mxu0 %v513
    %v515 = vand.u32 %v77, 4294901760
    %516 = vmatpush.msra.mxu0 %v515
    %v517 = vand.u32 %v76, 4294901760
    %518 = vmatpush.msra.mxu0 %v517
    %v519 = vand.u32 %v75, 4294901760
    %520 = vmatpush.msra.mxu0 %v519
    %v521 = vand.u32 %v74, 4294901760
    %522 = vmatpush.msra.mxu0 %v521
    %v523 = vand.u32 %v73, 4294901760
    %524 = vmatpush.msra.mxu0 %v523
    %v525 = vand.u32 %v72, 4294901760
    %526 = vmatpush.msra.mxu0 %v525
    %v527 = vand.u32 %v71, 4294901760
    %528 = vmatpush.msra.mxu0 %v527
    %v529 = vand.u32 %v495, 4294901760
    %v530 = vsub.f32 %v495, %v529
    %v531 = vand.u32 %v530, 4294901760
    %v532 = vsub.f32 %v530, %v531
    %v533 = vand.u32 %v532, 4294901760
    %534 = vmatmul.f32.gmra.mxu0 %v533
    %v535 = vpop.f32.mrf.mxu0
    %v536 = vadd.f32 1e-06, %v535
    %v537 = vand.u32 %v496, 4294901760
    %v538 = vsub.f32 %v496, %v537
    %v539 = vand.u32 %v538, 4294901760
    %v540 = vsub.f32 %v538, %v539
    %v541 = vand.u32 %v540, 4294901760
    %542 = vmatmul.f32.gmra.mxu0 %v541
    %v543 = vpop.f32.mrf.mxu0
    %v544 = vadd.f32 1e-06, %v543
    %545 = vdwg.mxu0
    %v546 = vand.u32 %v86, 4294901760
    %v547 = vsub.f32 %v86, %v546
    %v548 = vand.u32 %v547, 4294901760
    %v549 = vsub.f32 %v547, %v548
    %v550 = vand.u32 %v549, 4294901760
    %551 = vmatpush.msra.mxu0 %v550
    %v552 = vand.u32 %v85, 4294901760
    %v553 = vsub.f32 %v85, %v552
    %v554 = vand.u32 %v553, 4294901760
    %v555 = vsub.f32 %v553, %v554
    %v556 = vand.u32 %v555, 4294901760
    %557 = vmatpush.msra.mxu0 %v556
    %v558 = vand.u32 %v84, 4294901760
    %v559 = vsub.f32 %v84, %v558
    %v560 = vand.u32 %v559, 4294901760
    %v561 = vsub.f32 %v559, %v560
    %v562 = vand.u32 %v561, 4294901760
    %563 = vmatpush.msra.mxu0 %v562
    %v564 = vand.u32 %v83, 4294901760
    %v565 = vsub.f32 %v83, %v564
    %v566 = vand.u32 %v565, 4294901760
    %v567 = vsub.f32 %v565, %v566
    %v568 = vand.u32 %v567, 4294901760
    %569 = vmatpush.msra.mxu0 %v568
    %v570 = vand.u32 %v82, 4294901760
    %v571 = vsub.f32 %v82, %v570
    %v572 = vand.u32 %v571, 4294901760
    %v573 = vsub.f32 %v571, %v572
    %v574 = vand.u32 %v573, 4294901760
    %575 = vmatpush.msra.mxu0 %v574
    %v576 = vand.u32 %v81, 4294901760
    %v577 = vsub.f32 %v81, %v576
    %v578 = vand.u32 %v577, 4294901760
    %v579 = vsub.f32 %v577, %v578
    %v580 = vand.u32 %v579, 4294901760
    %581 = vmatpush.msra.mxu0 %v580
    %v582 = vand.u32 %v80, 4294901760
    %v583 = vsub.f32 %v80, %v582
    %v584 = vand.u32 %v583, 4294901760
    %v585 = vsub.f32 %v583, %v584
    %v586 = vand.u32 %v585, 4294901760
    %587 = vmatpush.msra.mxu0 %v586
    %v588 = vand.u32 %v79, 4294901760
    %v589 = vsub.f32 %v79, %v588
    %v590 = vand.u32 %v589, 4294901760
    %v591 = vsub.f32 %v589, %v590
    %v592 = vand.u32 %v591, 4294901760
    %593 = vmatpush.msra.mxu0 %v592
    %v594 = vand.u32 %v78, 4294901760
    %v595 = vsub.f32 %v78, %v594
    %v596 = vand.u32 %v595, 4294901760
    %v597 = vsub.f32 %v595, %v596
    %v598 = vand.u32 %v597, 4294901760
    %599 = vmatpush.msra.mxu0 %v598
    %v600 = vand.u32 %v77, 4294901760
    %v601 = vsub.f32 %v77, %v600
    %v602 = vand.u32 %v601, 4294901760
    %v603 = vsub.f32 %v601, %v602
    %v604 = vand.u32 %v603, 4294901760
    %605 = vmatpush.msra.mxu0 %v604
    %v606 = vand.u32 %v76, 4294901760
    %v607 = vsub.f32 %v76, %v606
    %v608 = vand.u32 %v607, 4294901760
    %v609 = vsub.f32 %v607, %v608
    %v610 = vand.u32 %v609, 4294901760
    %611 = vmatpush.msra.mxu0 %v610
    %v612 = vand.u32 %v75, 4294901760
    %v613 = vsub.f32 %v75, %v612
    %v614 = vand.u32 %v613, 4294901760
    %v615 = vsub.f32 %v613, %v614
    %v616 = vand.u32 %v615, 4294901760
    %617 = vmatpush.msra.mxu0 %v616
    %v618 = vand.u32 %v74, 4294901760
    %v619 = vsub.f32 %v74, %v618
    %v620 = vand.u32 %v619, 4294901760
    %v621 = vsub.f32 %v619, %v620
    %v622 = vand.u32 %v621, 4294901760
    %623 = vmatpush.msra.mxu0 %v622
    %v624 = vand.u32 %v73, 4294901760
    %v625 = vsub.f32 %v73, %v624
    %v626 = vand.u32 %v625, 4294901760
    %v627 = vsub.f32 %v625, %v626
    %v628 = vand.u32 %v627, 4294901760
    %629 = vmatpush.msra.mxu0 %v628
    %v630 = vand.u32 %v72, 4294901760
    %v631 = vsub.f32 %v72, %v630
    %v632 = vand.u32 %v631, 4294901760
    %v633 = vsub.f32 %v631, %v632
    %v634 = vand.u32 %v633, 4294901760
    %635 = vmatpush.msra.mxu0 %v634
    %v636 = vand.u32 %v71, 4294901760
    %v637 = vsub.f32 %v71, %v636
    %v638 = vand.u32 %v637, 4294901760
    %v639 = vsub.f32 %v637, %v638
    %v640 = vand.u32 %v639, 4294901760
    %641 = vmatpush.msra.mxu0 %v640
    %v642 = vand.u32 %v495, 4294901760
    %643 = vmatmul.f32.gmra.mxu0 %v642
    %v644 = vpop.f32.mrf.mxu0
    %v645 = vadd.f32 %v536, %v644
    %v646 = vand.u32 %v496, 4294901760
    %647 = vmatmul.f32.gmra.mxu0 %v646
    %v648 = vpop.f32.mrf.mxu0
    %v649 = vadd.f32 %v544, %v648
    %650 = vdwg.mxu0
    %v651 = vand.u32 %v86, 4294901760
    %v652 = vsub.f32 %v86, %v651
    %653 = vmatpush.msra.mxu0 %v652
    %v654 = vand.u32 %v85, 4294901760
    %v655 = vsub.f32 %v85, %v654
    %656 = vmatpush.msra.mxu0 %v655
    %v657 = vand.u32 %v84, 4294901760
    %v658 = vsub.f32 %v84, %v657
    %659 = vmatpush.msra.mxu0 %v658
    %v660 = vand.u32 %v83, 4294901760
    %v661 = vsub.f32 %v83, %v660
    %662 = vmatpush.msra.mxu0 %v661
    %v663 = vand.u32 %v82, 4294901760
    %v664 = vsub.f32 %v82, %v663
    %665 = vmatpush.msra.mxu0 %v664
    %v666 = vand.u32 %v81, 4294901760
    %v667 = vsub.f32 %v81, %v666
    %668 = vmatpush.msra.mxu0 %v667
    %v669 = vand.u32 %v80, 4294901760
    %v670 = vsub.f32 %v80, %v669
    %671 = vmatpush.msra.mxu0 %v670
    %v672 = vand.u32 %v79, 4294901760
    %v673 = vsub.f32 %v79, %v672
    %674 = vmatpush.msra.mxu0 %v673
    %v675 = vand.u32 %v78, 4294901760
    %v676 = vsub.f32 %v78, %v675
    %677 = vmatpush.msra.mxu0 %v676
    %v678 = vand.u32 %v77, 4294901760
    %v679 = vsub.f32 %v77, %v678
    %680 = vmatpush.msra.mxu0 %v679
    %v681 = vand.u32 %v76, 4294901760
    %v682 = vsub.f32 %v76, %v681
    %683 = vmatpush.msra.mxu0 %v682
    %v684 = vand.u32 %v75, 4294901760
    %v685 = vsub.f32 %v75, %v684
    %686 = vmatpush.msra.mxu0 %v685
    %v687 = vand.u32 %v74, 4294901760
    %v688 = vsub.f32 %v74, %v687
    %689 = vmatpush.msra.mxu0 %v688
    %v690 = vand.u32 %v73, 4294901760
    %v691 = vsub.f32 %v73, %v690
    %692 = vmatpush.msra.mxu0 %v691
    %v693 = vand.u32 %v72, 4294901760
    %v694 = vsub.f32 %v72, %v693
    %695 = vmatpush.msra.mxu0 %v694
    %v696 = vand.u32 %v71, 4294901760
    %v697 = vsub.f32 %v71, %v696
    %698 = vmatpush.msra.mxu0 %v697
    %v699 = vand.u32 %v495, 4294901760
    %v700 = vsub.f32 %v495, %v699
    %701 = vmatmul.f32.gmra.mxu0 %v700
    %v702 = vpop.f32.mrf.mxu0
    %v703 = vadd.f32 %v645, %v702
    %v704 = vand.u32 %v496, 4294901760
    %v705 = vsub.f32 %v496, %v704
    %706 = vmatmul.f32.gmra.mxu0 %v705
    %v707 = vpop.f32.mrf.mxu0
    %v708 = vadd.f32 %v649, %v707
    %709 = vdwg.mxu0
    %v710 = vand.u32 %v86, 4294901760
    %711 = vmatpush.msra.mxu0 %v710
    %v712 = vand.u32 %v85, 4294901760
    %713 = vmatpush.msra.mxu0 %v712
    %v714 = vand.u32 %v84, 4294901760
    %715 = vmatpush.msra.mxu0 %v714
    %v716 = vand.u32 %v83, 4294901760
    %717 = vmatpush.msra.mxu0 %v716
    %v718 = vand.u32 %v82, 4294901760
    %719 = vmatpush.msra.mxu0 %v718
    %v720 = vand.u32 %v81, 4294901760
    %721 = vmatpush.msra.mxu0 %v720
    %v722 = vand.u32 %v80, 4294901760
    %723 = vmatpush.msra.mxu0 %v722
    %v724 = vand.u32 %v79, 4294901760
    %725 = vmatpush.msra.mxu0 %v724
    %v726 = vand.u32 %v78, 4294901760
    %727 = vmatpush.msra.mxu0 %v726
    %v728 = vand.u32 %v77, 4294901760
    %729 = vmatpush.msra.mxu0 %v728
    %v730 = vand.u32 %v76, 4294901760
    %731 = vmatpush.msra.mxu0 %v730
    %v732 = vand.u32 %v75, 4294901760
    %733 = vmatpush.msra.mxu0 %v732
    %v734 = vand.u32 %v74, 4294901760
    %735 = vmatpush.msra.mxu0 %v734
    %v736 = vand.u32 %v73, 4294901760
    %737 = vmatpush.msra.mxu0 %v736
    %v738 = vand.u32 %v72, 4294901760
    %739 = vmatpush.msra.mxu0 %v738
    %v740 = vand.u32 %v71, 4294901760
    %741 = vmatpush.msra.mxu0 %v740
    %v742 = vand.u32 %v495, 4294901760
    %v743 = vsub.f32 %v495, %v742
    %v744 = vand.u32 %v743, 4294901760
    %745 = vmatmul.f32.gmra.mxu0 %v744
    %v746 = vpop.f32.mrf.mxu0
    %v747 = vadd.f32 %v703, %v746
    %v748 = vand.u32 %v496, 4294901760
    %v749 = vsub.f32 %v496, %v748
    %v750 = vand.u32 %v749, 4294901760
    %751 = vmatmul.f32.gmra.mxu0 %v750
    %v752 = vpop.f32.mrf.mxu0
    %v753 = vadd.f32 %v708, %v752
    %754 = vdwg.mxu0
    %v755 = vand.u32 %v86, 4294901760
    %v756 = vsub.f32 %v86, %v755
    %v757 = vand.u32 %v756, 4294901760
    %758 = vmatpush.msra.mxu0 %v757
    %v759 = vand.u32 %v85, 4294901760
    %v760 = vsub.f32 %v85, %v759
    %v761 = vand.u32 %v760, 4294901760
    %762 = vmatpush.msra.mxu0 %v761
    %v763 = vand.u32 %v84, 4294901760
    %v764 = vsub.f32 %v84, %v763
    %v765 = vand.u32 %v764, 4294901760
    %766 = vmatpush.msra.mxu0 %v765
    %v767 = vand.u32 %v83, 4294901760
    %v768 = vsub.f32 %v83, %v767
    %v769 = vand.u32 %v768, 4294901760
    %770 = vmatpush.msra.mxu0 %v769
    %v771 = vand.u32 %v82, 4294901760
    %v772 = vsub.f32 %v82, %v771
    %v773 = vand.u32 %v772, 4294901760
    %774 = vmatpush.msra.mxu0 %v773
    %v775 = vand.u32 %v81, 4294901760
    %v776 = vsub.f32 %v81, %v775
    %v777 = vand.u32 %v776, 4294901760
    %778 = vmatpush.msra.mxu0 %v777
    %v779 = vand.u32 %v80, 4294901760
    %v780 = vsub.f32 %v80, %v779
    %v781 = vand.u32 %v780, 4294901760
    %782 = vmatpush.msra.mxu0 %v781
    %v783 = vand.u32 %v79, 4294901760
    %v784 = vsub.f32 %v79, %v783
    %v785 = vand.u32 %v784, 4294901760
    %786 = vmatpush.msra.mxu0 %v785
    %v787 = vand.u32 %v78, 4294901760
    %v788 = vsub.f32 %v78, %v787
    %v789 = vand.u32 %v788, 4294901760
    %790 = vmatpush.msra.mxu0 %v789
    %v791 = vand.u32 %v77, 4294901760
    %v792 = vsub.f32 %v77, %v791
    %v793 = vand.u32 %v792, 4294901760
    %794 = vmatpush.msra.mxu0 %v793
    %v795 = vand.u32 %v76, 4294901760
    %v796 = vsub.f32 %v76, %v795
    %v797 = vand.u32 %v796, 4294901760
    %798 = vmatpush.msra.mxu0 %v797
    %v799 = vand.u32 %v75, 4294901760
    %v800 = vsub.f32 %v75, %v799
    %v801 = vand.u32 %v800, 4294901760
    %802 = vmatpush.msra.mxu0 %v801
    %v803 = vand.u32 %v74, 4294901760
    %v804 = vsub.f32 %v74, %v803
    %v805 = vand.u32 %v804, 4294901760
    %806 = vmatpush.msra.mxu0 %v805
    %v807 = vand.u32 %v73, 4294901760
    %v808 = vsub.f32 %v73, %v807
    %v809 = vand.u32 %v808, 4294901760
    %810 = vmatpush.msra.mxu0 %v809
    %v811 = vand.u32 %v72, 4294901760
    %v812 = vsub.f32 %v72, %v811
    %v813 = vand.u32 %v812, 4294901760
    %814 = vmatpush.msra.mxu0 %v813
    %v815 = vand.u32 %v71, 4294901760
    %v816 = vsub.f32 %v71, %v815
    %v817 = vand.u32 %v816, 4294901760
    %818 = vmatpush.msra.mxu0 %v817
    %v819 = vand.u32 %v495, 4294901760
    %820 = vmatmul.f32.gmra.mxu0 %v819
    %v821 = vpop.f32.mrf.mxu0
    %v822 = vadd.f32 %v747, %v821
    %v823 = vand.u32 %v496, 4294901760
    %824 = vmatmul.f32.gmra.mxu0 %v823
    %v825 = vpop.f32.mrf.mxu0
    %v826 = vadd.f32 %v753, %v825
    %827 = vdwg.mxu0
    %v828 = vand.u32 %v86, 4294901760
    %829 = vmatpush.msra.mxu0 %v828
    %v830 = vand.u32 %v85, 4294901760
    %831 = vmatpush.msra.mxu0 %v830
    %v832 = vand.u32 %v84, 4294901760
    %833 = vmatpush.msra.mxu0 %v832
    %v834 = vand.u32 %v83, 4294901760
    %835 = vmatpush.msra.mxu0 %v834
    %v836 = vand.u32 %v82, 4294901760
    %837 = vmatpush.msra.mxu0 %v836
    %v838 = vand.u32 %v81, 4294901760
    %839 = vmatpush.msra.mxu0 %v838
    %v840 = vand.u32 %v80, 4294901760
    %841 = vmatpush.msra.mxu0 %v840
    %v842 = vand.u32 %v79, 4294901760
    %843 = vmatpush.msra.mxu0 %v842
    %v844 = vand.u32 %v78, 4294901760
    %845 = vmatpush.msra.mxu0 %v844
    %v846 = vand.u32 %v77, 4294901760
    %847 = vmatpush.msra.mxu0 %v846
    %v848 = vand.u32 %v76, 4294901760
    %849 = vmatpush.msra.mxu0 %v848
    %v850 = vand.u32 %v75, 4294901760
    %851 = vmatpush.msra.mxu0 %v850
    %v852 = vand.u32 %v74, 4294901760
    %853 = vmatpush.msra.mxu0 %v852
    %v854 = vand.u32 %v73, 4294901760
    %855 = vmatpush.msra.mxu0 %v854
    %v856 = vand.u32 %v72, 4294901760
    %857 = vmatpush.msra.mxu0 %v856
    %v858 = vand.u32 %v71, 4294901760
    %859 = vmatpush.msra.mxu0 %v858
    %v860 = vand.u32 %v495, 4294901760
    %861 = vmatmul.f32.gmra.mxu0 %v860
    %v862 = vpop.f32.mrf.mxu0
    %v863 = vadd.f32 %v822, %v862
    %v864 = vand.u32 %v496, 4294901760
    %865 = vmatmul.f32.gmra.mxu0 %v864
    %v866 = vpop.f32.mrf.mxu0
    %v867 = vadd.f32 %v826, %v866
    %868 = vdwg.mxu0
    %v869 = vrsqrt.pop %v863
    %v870 = vmul.f32 %v869, %v863
    %v871 = vmul.f32 %v870, %v869
    %v872 = vmul.f32 0.5, %v871
    %v873 = vsub.f32 1.5, %v872
    %v874 = vmul.f32 %v869, %v873
    %vm875 = vweird.f32 %v863
    %vm876 = vweird.f32 %v869
    %vm877 = vmor %vm875, %vm876
    %v878 = vsel %vm877, %v869, %v874
    %v879 = vrsqrt.pop %v867
    %v880 = vmul.f32 %v879, %v867
    %v881 = vmul.f32 %v880, %v879
    %v882 = vmul.f32 0.5, %v881
    %v883 = vsub.f32 1.5, %v882
    %v884 = vmul.f32 %v879, %v883
    %vm885 = vweird.f32 %v867
    %vm886 = vweird.f32 %v879
    %vm887 = vmor %vm885, %vm886
    %v888 = vsel %vm887, %v879, %v884
    %v889 = vmul.f32 %v493, %v878
    %v890 = vmul.f32 %v494, %v888
    %v891 = vld [vmem:[%s3] sm:$0x1]
    %v893 = vperm.slane %v891, 0
    %v895 = vmul.f32 %v889, %v893
    %v896 = vmul.f32 %v890, %v893
    %897 = vst [vmem:[#allocation9] sm:$0xff] %v895
    %898 = vst [vmem:[#allocation9 + $0x8] sm:$0xff] %v896
    // Predicated region
    $region34: #{tpu_custom_call.1} parent=1 // pred_check
      _
    $region35: #{tpu_custom_call.1} parent=1 // pred_check_branch
      %900 = sbr.rel (0) target = $region37
    $region36: #{tpu_custom_call.1} parent=1 // pred_region
      %902 = vsyncadd [#allocation4], 0
      %s903 = sshll.u32 [#allocation8], 4
      %s904 = int_to_ptr.vmem [resolvable:$true] %s903
      %s905 = sshll.u32 %s5, 4
      %s906 = int_to_ptr.hbm [resolvable:$true] %s905
      %911 = dma.vmem_to_hbm [thread:$0]  %s904, 256, %s906, [#allocation4], 128, 128, 8
    $region37: #{tpu_custom_call.1} parent=1 // pred_fallthru
      _
    // Predicated region
    $region38: #{tpu_custom_call.1} parent=1 // pred_check
      _
    $region39: #{tpu_custom_call.1} parent=1 // pred_check_branch
      %913 = sbr.rel (0) target = $region41
    $region40: #{tpu_custom_call.1} parent=1 // pred_region
      %915 = vsyncadd [#allocation10], 0
      %s916 = sshll.u32 [#allocation9], 4
      %s917 = int_to_ptr.vmem [resolvable:$true] %s916
      %s918 = sshll.u32 %s6, 4
      %s919 = int_to_ptr.hbm [resolvable:$true] %s918
      %924 = dma.vmem_to_hbm [thread:$0]  %s917, 256, %s919, [#allocation10], 128, 128, 8
    $region41: #{tpu_custom_call.1} parent=1 // pred_fallthru
      _
    // Predicated region
    $region42: #{tpu_custom_call.1} parent=1 // pred_check
      _
    $region43: #{tpu_custom_call.1} parent=1 // pred_check_branch
      %926 = sbr.rel (0) target = $region45
    $region44: #{tpu_custom_call.1} parent=1 // pred_region
      %928 = dma.done [#allocation4], 256
    $region45: #{tpu_custom_call.1} parent=1 // pred_fallthru
      _
    // Predicated region
    $region46: #{tpu_custom_call.1} parent=1 // pred_check
      _
    $region47: #{tpu_custom_call.1} parent=1 // pred_check_branch
      %930 = sbr.rel (0) target = $region49
    $region48: #{tpu_custom_call.1} parent=1 // pred_region
      %932 = dma.done [#allocation10], 256
    $region49: #{tpu_custom_call.1} parent=1 // pred_fallthru
      _
    %933 = vsyncpa [#allocation3], 1
    %934 = vsyncpa [#allocation6], 1
    %935 = vsyncpa [#allocation4], 1
    %936 = vsyncpa [#allocation10], 1

</llo_original>
